<compile_context>
chip_gen: v5e
topology: v5e:2x2
jax: 0.10.0
libtpu: 0.0.40
codegen_flags: <defaults>
</compile_context>

<pallas_src>
import jax
import jax.numpy as jnp
from jax.experimental import pallas as pl
from jax.experimental.pallas import tpu as pltpu


def patch_proj_kernel(xp_ref, w_ref, pos_ref, o_ref):
    # xp_ref : (TB, N+1, K)  patch rows (bf16/f32); row 0 of each batch is zeros (cls slot)
    # w_ref  : (K, E)        flattened conv weight, VMEM-resident across the whole grid
    # pos_ref: (N+1, E)      f32: row 0 = cls + pos[0]; rows 1.. = pos[1:] + conv bias
    # o_ref  : (TB, N+1, E)  final output rows (no wrapper-side concat/slice needed)
    w = w_ref[...]
    pos = pos_ref[...]
    for b in range(xp_ref.shape[0]):          # TB is small & static -> unrolled
        proj = jnp.dot(xp_ref[b], w, preferred_element_type=jnp.float32)
        o_ref[b] = (proj + pos).astype(o_ref.dtype)


def _pick_batch_tile(B, rows_per_batch, target_rows):
    """Batches per grid step: ~target_rows rows/step, >= 2 grid steps when B >= 2."""
    tb = max(1, min(B, target_rows // max(rows_per_batch, 1)))
    if B >= 2:
        tb = max(1, min(tb, B // 2))   # keep >= 2 steps so megacore can split the grid
    while B % tb != 0:                 # keep blocks in-bounds (TB must divide B)
        tb -= 1
    return tb


def patch_embedding(x, w_conv, b_conv, cls_token, pos_embed, patch_size, *,
                    compute_dtype=jnp.bfloat16, out_dtype=jnp.float32,
                    target_rows_per_step=512):
    """x: (B, C, H, W) NCHW (PyTorch layout). Returns (B, num_patches + 1, E)."""
    B, C, H, W = x.shape
    P = patch_size
    nh, nw = H // P, W // P
    N = nh * nw
    Np1 = N + 1
    E = w_conv.shape[0]
    K = C * P * P

    # ---- glue: patchify (cast to bf16 FIRST so the materialized copy is half-size) ----
    # TODO(synk): fuse the strided patch gather into the pallas_call (BlockSpec over NCHW
    # with a row-permuted weight) to remove this activation round trip entirely.
    x = x[:, :, :nh * P, :nw * P].astype(compute_dtype)
    xp = x.reshape(B, C, nh, P, nw, P)
    xp = jnp.transpose(xp, (0, 2, 4, 1, 3, 5)).reshape(B, N, K)
    # one zero row per batch in the cls slot: zero_row @ W + pos_row0 == cls + pos[0]
    xp = jnp.pad(xp, ((0, 0), (1, 0), (0, 0)))                    # (B, N+1, K)

    # conv weight (E, C, P, P) -> (K, E); same (c, kh, kw) flattening order as the patches
    w_mat = w_conv.reshape(E, K).T.astype(compute_dtype)

    # fold conv bias + cls token into one tiny (N+1, E) f32 table
    pos = pos_embed.reshape(Np1, E).astype(jnp.float32)
    pos_table = jnp.concatenate(
        [cls_token.reshape(1, E).astype(jnp.float32) + pos[0:1],
         pos[1:] + b_conv.reshape(1, E).astype(jnp.float32)], axis=0)

    # ---- grid: group TB batches per step (~target_rows_per_step output rows) ----
    TB = _pick_batch_tile(B, Np1, target_rows_per_step)
    grid = (B // TB,)

    in_itemsize = jnp.dtype(compute_dtype).itemsize
    out_itemsize = jnp.dtype(out_dtype).itemsize
    vmem_need = (2 * TB * Np1 * (K * in_itemsize + E * out_itemsize)   # double-buffered I/O
                 + K * E * in_itemsize + Np1 * E * 4)                  # resident w + pos
    vmem_limit = int(min(max(2 * vmem_need, 32 * 1024 * 1024), 64 * 1024 * 1024))

    grid_spec = pltpu.PrefetchScalarGridSpec(
        num_scalar_prefetch=0,
        grid=grid,
        in_specs=[
            pl.BlockSpec((TB, Np1, K), lambda i: (i, 0, 0)),
            # resident operands: constant block index + single buffer (no re-DMA, no 2x VMEM)
            pl.BlockSpec((K, E), lambda i: (0, 0), pipeline_mode=pl.Buffered(1)),
            pl.BlockSpec((Np1, E), lambda i: (0, 0), pipeline_mode=pl.Buffered(1)),
        ],
        out_specs=pl.BlockSpec((TB, Np1, E), lambda i: (i, 0, 0)),
    )

    return pl.pallas_call(
        patch_proj_kernel,
        out_shape=jax.ShapeDtypeStruct((B, Np1, E), out_dtype),
        grid_spec=grid_spec,
        compiler_params=pltpu.CompilerParams(
            dimension_semantics=("parallel",),      # batch-group axis is independent
            vmem_limit_bytes=vmem_limit),
    )(xp, w_mat, pos_table)


def patch_embedding_ref(x, w_conv, b_conv, cls_token, pos_embed, patch_size):
    """Pure-JAX f32 reference mirroring the PyTorch forward."""
    B, C, H, W = x.shape
    P = patch_size
    nh, nw = H // P, W // P
    N = nh * nw
    E = w_conv.shape[0]
    xp = x.reshape(B, C, nh, P, nw, P)
    xp = jnp.transpose(xp, (0, 2, 4, 1, 3, 5)).reshape(B, N, C * P * P)
    proj = jnp.einsum("bnk,ke->bne", xp, w_conv.reshape(E, -1).T) + b_conv
    cls = jnp.broadcast_to(cls_token.reshape(1, 1, E), (B, 1, E))
    return jnp.concatenate([cls, proj], axis=1) + pos_embed.reshape(1, N + 1, E)


if __name__ == "__main__":
    # Small, conv-consistent shapes: img_size=16, patch_size=8, in_channels=4, embed_dim=128
    B, C, IMG, P, E = 2, 4, 16, 8, 128
    N = (IMG // P) ** 2  # 4 patches

    key = jax.random.PRNGKey(0)
    kx, kw, kb, kc, kp = jax.random.split(key, 5)

    x = jax.random.normal(kx, (B, C, IMG, IMG), dtype=jnp.float32)
    w_conv = jax.random.normal(kw, (E, C, P, P), dtype=jnp.float32) * 0.02
    b_conv = jax.random.normal(kb, (E,), dtype=jnp.float32) * 0.02
    cls_token = jax.random.normal(kc, (1, 1, E), dtype=jnp.float32)
    pos_embed = jax.random.normal(kp, (1, N + 1, E), dtype=jnp.float32)

    ref = patch_embedding_ref(x, w_conv, b_conv, cls_token, pos_embed, P)

    # f32 compute path: tight check of kernel structure / indexing (TB=1, grid=(2,)).
    out_f32 = jax.block_until_ready(
        patch_embedding(x, w_conv, b_conv, cls_token, pos_embed, P,
                        compute_dtype=jnp.float32))
    assert out_f32.shape == (B, N + 1, E)
    assert jnp.allclose(out_f32, ref, atol=1e-4, rtol=1e-4)

    # bf16 MXU path (default / fast): expected bf16 numerics.
    out_bf16 = jax.block_until_ready(
        patch_embedding(x, w_conv, b_conv, cls_token, pos_embed, P))
    assert out_bf16.shape == (B, N + 1, E)
    assert jnp.allclose(out_bf16, ref, atol=2e-2, rtol=2e-2)

    # Batch-grouped path (TB > 1, grid=(2,)) to exercise the in-kernel batch loop.
    B2 = 4
    x2 = jax.random.normal(kx, (B2, C, IMG, IMG), dtype=jnp.float32)
    ref2 = patch_embedding_ref(x2, w_conv, b_conv, cls_token, pos_embed, P)
    out2 = jax.block_until_ready(
        patch_embedding(x2, w_conv, b_conv, cls_token, pos_embed, P,
                        target_rows_per_step=16))
    assert out2.shape == (B2, N + 1, E)
    assert jnp.allclose(out2, ref2, atol=2e-2, rtol=2e-2)

    print("KERNEL_OK")
</pallas_src>

<mosaic_0001>
module attributes {stable_mosaic.version = 11 : i64} {
  func.func @patch_proj_kernel(%arg0: i32, %arg1: memref<1x5x256xf32, #tpu.memory_space<vmem>>, %arg2: memref<256x128xf32, #tpu.memory_space<vmem>>, %arg3: memref<5x128xf32, #tpu.memory_space<vmem>>, %arg4: memref<1x5x128xf32, #tpu.memory_space<vmem>>) attributes {dimension_semantics = [#tpu.dimension_semantics<parallel>], iteration_bounds = array<i64: 2>, scalar_prefetch = 0 : i64, scratch_operands = 0 : i64, tpu.core_type = #tpu.core_type<tc>, window_params = [{transform_indices = @transform_0, window_bounds = array<i64: 1, 5, 256>}, {pipeline_mode = #tpu.pipeline_mode<synchronous>, transform_indices = @transform_1, window_bounds = array<i64: 256, 128>}, {pipeline_mode = #tpu.pipeline_mode<synchronous>, transform_indices = @transform_2, window_bounds = array<i64: 5, 128>}, {transform_indices = @transform_3, window_bounds = array<i64: 1, 5, 128>}]} {
    %c0 = arith.constant 0 : index
    %c0_0 = arith.constant 0 : index
    %0 = vector.load %arg2[%c0, %c0_0] : memref<256x128xf32, #tpu.memory_space<vmem>>, vector<256x128xf32>
    %c0_1 = arith.constant 0 : index
    %c0_2 = arith.constant 0 : index
    %1 = vector.load %arg3[%c0_1, %c0_2] : memref<5x128xf32, #tpu.memory_space<vmem>>, vector<5x128xf32>
    %c0_3 = arith.constant 0 : index
    %c0_4 = arith.constant 0 : index
    %c0_5 = arith.constant 0 : index
    %2 = vector.load %arg1[%c0_3, %c0_4, %c0_5] : memref<1x5x256xf32, #tpu.memory_space<vmem>>, vector<1x5x256xf32>
    %3 = vector.shape_cast %2 : vector<1x5x256xf32> to vector<5x256xf32>
    %cst = arith.constant dense<0.000000e+00> : vector<5x128xf32>
    %4 = tpu.matmul %3, %0, %cst {dimension_numbers = #tpu.dot_dimension_numbers<[1], [0], [0], [1], [0, 0, 1, 1], [], []>} : vector<5x256xf32>, vector<256x128xf32>, vector<5x128xf32> -> vector<5x128xf32>
    %5 = arith.addf %4, %1 : vector<5x128xf32>
    %c0_6 = arith.constant 0 : index
    %c0_7 = arith.constant 0 : index
    %c0_8 = arith.constant 0 : index
    %6 = vector.load %arg4[%c0_6, %c0_7, %c0_8] : memref<1x5x128xf32, #tpu.memory_space<vmem>>, vector<1x5x128xf32>
    %7 = vector.shape_cast %6 : vector<1x5x128xf32> to vector<5x128xf32>
    %8 = vector.shape_cast %5 : vector<5x128xf32> to vector<1x5x128xf32>
    tpu.vector_store %arg4[%c0_6, %c0_7, %c0_8], %8 {strides = array<i32>} : memref<1x5x128xf32, #tpu.memory_space<vmem>>, vector<1x5x128xf32>,
    return
  }
  func.func @transform_0(%arg0: i32) -> (i32, i32, i32) {
    %c0_i32 = arith.constant 0 : i32
    %c0_i32_0 = arith.constant 0 : i32
    %c0_i32_1 = arith.constant 0 : i32
    return %arg0, %c0_i32, %c0_i32_0 : i32, i32, i32
  }
  func.func @transform_1(%arg0: i32) -> (i32, i32) {
    %c0_i32 = arith.constant 0 : i32
    %c0_i32_0 = arith.constant 0 : i32
    %c0_i32_1 = arith.constant 0 : i32
    return %c0_i32, %c0_i32_0 : i32, i32
  }
  func.func @transform_2(%arg0: i32) -> (i32, i32) {
    %c0_i32 = arith.constant 0 : i32
    %c0_i32_0 = arith.constant 0 : i32
    %c0_i32_1 = arith.constant 0 : i32
    return %c0_i32, %c0_i32_0 : i32, i32
  }
  func.func @transform_3(%arg0: i32) -> (i32, i32, i32) {
    %c0_i32 = arith.constant 0 : i32
    %c0_i32_0 = arith.constant 0 : i32
    %c0_i32_1 = arith.constant 0 : i32
    return %arg0, %c0_i32, %c0_i32_0 : i32, i32, i32
  }
}

</mosaic_0001>

<llo_original>
// kernel: tpu_custom_call.1
$region0: #{tpu_custom_call.1}
  #allocation0 [shape = 'u32[]', space=smem, size = 0x4, offset = 0x4, fixed_abs, tag = 'smem constant byte address 0x4 - core index']
  #allocation1 [shape = 'u32[72,128]{1,0:T(1,128)}', space=vmem, size = 0x9000, scoped, tag = 'internal scratch']
  %s0 = inlined_call_operand.vmem [shape: f32[2,5,256], index: 0, kind: input, shape index: {}]
  %s1 = inlined_call_operand.hbm [shape: f32[256,128], index: 1, kind: input, shape index: {}]
  %s2 = inlined_call_operand.vmem [shape: f32[5,128], index: 2, kind: input, shape index: {}]
  %s3 = inlined_call_operand.vmem [shape: f32[2,5,128], index: 3, kind: output, shape index: {}]
  %s4 = sld [smem:[#allocation0]]
  $region49: #{tpu_custom_call.1} parent=0
    _
  %s6 = ssub.s32 1, %s4
  %s7 = scalar_select 0, %s6, %s4
  $region1: #{tpu_custom_call.1} parent=0
    #allocation2 [shape = 'u8[131072]{0}', space=vmem, size = 0x20000, scoped, tag = 'input window, operand 1, single buffered']
    #allocation3 [shape = 's32[2]{0}', space=sflag, size = 0x8, scoped, tag = 'scoped memory for tpu_custom_call.1']
    %8 = vsyncpa [#allocation3], 0
    loop: start=0, step=1, limit=4
    $region2: #{tpu_custom_call.1} parent=1 // loop_pre_header
      _
    $region3: #{tpu_custom_call.1} parent=1 // loop_header
      %s10 = sphi 0, %s14
      %p11 = scmp.ge.s32.totalorder %s10, 4
      %s20 = sphi 0, %s22
      %s23 = sphi 0, %s20
      %s24 = sphi 0, %s23
      %s40 = sphi 0, %s24
      %s44 = sphi 0, %s44
      %s46 = sphi 0, %s44
      %s47 = sphi 0, %s46
      %s61 = sphi 0, %s47
      %s65 = sphi 0, %s65
      %s67 = sphi 0, %s65
      %s68 = sphi 0, %s67
      %s82 = sphi 0, %s68
      %s88 = sphi 0, %s90
      %s91 = sphi 0, %s88
      %s92 = sphi 0, %s91
      %s108 = sphi 0, %s92
    $region4: #{tpu_custom_call.1} parent=1 // loop_header_branch
      %13 = sbr.rel (%p11) target = $region8
    $region5: #{tpu_custom_call.1} parent=1 // loop_body
      %s15 = ssub.s32 %s10, 1
      %s16 = ssub.s32 %s10, 2
      %s17 = sadd.s32 %s10, 1
      %s18 = ssub.s32 %s10, %s17
      %p19 = scmp.eq.s32.totalorder %s18, 0
      %s21 = sadd.s32 %s20, 1
      %s22 = scalar_select %p19, %s20, %s21
      %p25 = pneg %p19
      %p26 = scmp.eq.s32.totalorder %s10, 1
      %p27 = por %p25, %p26
      %p28 = scmp.ne.s32.totalorder %s20, %s23
      %p29 = scmp.eq.s32.totalorder %s10, 0
      %p30 = por %p28, %p29
      %p31 = scmp.ne.s32.totalorder %s20, %s23
      %p32 = scmp.eq.s32.totalorder %s15, 1
      %p33 = por %p31, %p32
      %p34 = scmp.ne.s32.totalorder %s23, %s24
      %p35 = scmp.eq.s32.totalorder %s15, 0
      %p36 = por %p34, %p35
      %p37 = scmp.ne.s32.totalorder %s23, %s24
      %p38 = scmp.eq.s32.totalorder %s16, 1
      %p39 = por %p37, %p38
      %p41 = scmp.ne.s32.totalorder %s24, %s40
      %p42 = scmp.eq.s32.totalorder %s16, 0
      %p43 = por %p41, %p42
      %s45 = sadd.s32 %s44, 1
      %p48 = scmp.eq.s32.totalorder %s10, 1
      %p49 = scmp.ne.s32.totalorder %s44, %s46
      %p50 = scmp.eq.s32.totalorder %s10, 0
      %p51 = por %p49, %p50
      %p52 = scmp.ne.s32.totalorder %s44, %s46
      %p53 = scmp.eq.s32.totalorder %s15, 1
      %p54 = por %p52, %p53
      %p55 = scmp.ne.s32.totalorder %s46, %s47
      %p56 = scmp.eq.s32.totalorder %s15, 0
      %p57 = por %p55, %p56
      %p58 = scmp.ne.s32.totalorder %s46, %s47
      %p59 = scmp.eq.s32.totalorder %s16, 1
      %p60 = por %p58, %p59
      %p62 = scmp.ne.s32.totalorder %s47, %s61
      %p63 = scmp.eq.s32.totalorder %s16, 0
      %p64 = por %p62, %p63
      %s66 = sadd.s32 %s65, 1
      %p69 = scmp.eq.s32.totalorder %s10, 1
      %p70 = scmp.ne.s32.totalorder %s65, %s67
      %p71 = scmp.eq.s32.totalorder %s10, 0
      %p72 = por %p70, %p71
      %p73 = scmp.ne.s32.totalorder %s65, %s67
      %p74 = scmp.eq.s32.totalorder %s15, 1
      %p75 = por %p73, %p74
      %p76 = scmp.ne.s32.totalorder %s67, %s68
      %p77 = scmp.eq.s32.totalorder %s15, 0
      %p78 = por %p76, %p77
      %p79 = scmp.ne.s32.totalorder %s67, %s68
      %p80 = scmp.eq.s32.totalorder %s16, 1
      %p81 = por %p79, %p80
      %p83 = scmp.ne.s32.totalorder %s68, %s82
      %p84 = scmp.eq.s32.totalorder %s16, 0
      %p85 = por %p83, %p84
      %s86 = ssub.s32 %s10, %s17
      %p87 = scmp.eq.s32.totalorder %s86, 0
      %s89 = sadd.s32 %s88, 1
      %s90 = scalar_select %p87, %s88, %s89
      %p93 = pneg %p87
      %p94 = scmp.eq.s32.totalorder %s10, 1
      %p95 = por %p93, %p94
      %p96 = scmp.ne.s32.totalorder %s88, %s91
      %p97 = scmp.eq.s32.totalorder %s10, 0
      %p98 = por %p96, %p97
      %p99 = scmp.ne.s32.totalorder %s88, %s91
      %p100 = scmp.eq.s32.totalorder %s15, 1
      %p101 = por %p99, %p100
      %p102 = scmp.ne.s32.totalorder %s91, %s92
      %p103 = scmp.eq.s32.totalorder %s15, 0
      %p104 = por %p102, %p103
      %p105 = scmp.ne.s32.totalorder %s91, %s92
      %p106 = scmp.eq.s32.totalorder %s16, 1
      %p107 = por %p105, %p106
      %p109 = scmp.ne.s32.totalorder %s92, %s108
      %p110 = scmp.eq.s32.totalorder %s16, 0
      %p111 = por %p109, %p110
      %p112 = scmp.le.s32.totalorder 1, %s10
      %p113 = scmp.lt.s32.totalorder %s10, 3
      %p114 = pnand %p112, %p113
      %p115 = pneg %p114
      // Predicated region
      $region9: #{tpu_custom_call.1} parent=5 // pred_check
        _
      $region10: #{tpu_custom_call.1} parent=5 // pred_check_branch
        %117 = sbr.rel (%p114) target = $region12
      $region11: #{tpu_custom_call.1} parent=5 // pred_region
        %s118 = ssub.s32 %s10, 1
        // Predicated region
        $region13: #{tpu_custom_call.1} parent=11 // pred_check
          %p119 = pneg %p57
        $region14: #{tpu_custom_call.1} parent=11 // pred_check_branch
          %121 = sbr.rel (%p119) target = $region16
        $region15: #{tpu_custom_call.1} parent=11 // pred_region
          %123 = vsyncadd [#allocation3], 0
          %s124 = sshll.u32 %s1, 4
          %s125 = int_to_ptr.hbm [resolvable:$true] %s124
          %s126 = sshll.u32 [#allocation2], 4
          %s127 = int_to_ptr.vmem [resolvable:$true] %s126
          %132 = dma.hbm_to_vmem [thread:$0]  %s125, 4096, %s127, [#allocation3], 128, 128, 8
        $region16: #{tpu_custom_call.1} parent=11 // pred_fallthru
          _
        // Predicated region
        $region17: #{tpu_custom_call.1} parent=11 // pred_check
          %p133 = pneg %p78
        $region18: #{tpu_custom_call.1} parent=11 // pred_check_branch
          %135 = sbr.rel (%p133) target = $region20
        $region19: #{tpu_custom_call.1} parent=11 // pred_region
          _
        $region20: #{tpu_custom_call.1} parent=11 // pred_fallthru
          _
      $region12: #{tpu_custom_call.1} parent=5 // pred_fallthru
        _
      %p136 = scmp.lt.s32.totalorder %s10, 2
      // Predicated region
      $region21: #{tpu_custom_call.1} parent=5 // pred_check
        %p137 = pneg %p136
      $region22: #{tpu_custom_call.1} parent=5 // pred_check_branch
        %139 = sbr.rel (%p137) target = $region24
      $region23: #{tpu_custom_call.1} parent=5 // pred_region
        // Predicated region
        $region25: #{tpu_custom_call.1} parent=23 // pred_check
          %p140 = pneg %p30
        $region26: #{tpu_custom_call.1} parent=23 // pred_check_branch
          %142 = sbr.rel (%p140) target = $region28
        $region27: #{tpu_custom_call.1} parent=23 // pred_region
          %p143 = scmp.lt.s32.totalorder %s10, 1
          %s144 = scalar_select %p143, %s10, 1
          %s145 = smul.addr %s144, 2
          %s146 = smul.addr %s145, 8
          %s147 = scalar_lea.vmem %s0, %s146
        $region28: #{tpu_custom_call.1} parent=23 // pred_fallthru
          _
      $region24: #{tpu_custom_call.1} parent=5 // pred_fallthru
        _
      %p148 = scmp.le.s32.totalorder 1, %s10
      %p149 = scmp.lt.s32.totalorder %s10, 3
      %p150 = pnand %p148, %p149
      %p151 = pneg %p150
      // Predicated region
      $region29: #{tpu_custom_call.1} parent=5 // pred_check
        _
      $region30: #{tpu_custom_call.1} parent=5 // pred_check_branch
        %153 = sbr.rel (%p150) target = $region32
      $region31: #{tpu_custom_call.1} parent=5 // pred_region
        %s154 = ssub.s32 %s10, 1
        // Predicated region
        $region33: #{tpu_custom_call.1} parent=31 // pred_check
          %p155 = pneg %p57
        $region34: #{tpu_custom_call.1} parent=31 // pred_check_branch
          %157 = sbr.rel (%p155) target = $region36
        $region35: #{tpu_custom_call.1} parent=31 // pred_region
          %159 = dma.done [#allocation3], 4096
        $region36: #{tpu_custom_call.1} parent=31 // pred_fallthru
          _
        %p160 = scmp.lt.s32.totalorder %s15, 1
        %s161 = scalar_select %p160, %s15, 1
        %s162 = smul.addr %s161, 2
        %s163 = smul.addr %s162, 8
        %s164 = scalar_lea.vmem %s0, %s163
        %p165 = pneg %p36
        %p166 = pneg %p33
        %p167 = pneg %p57
        %p168 = pneg %p54
        %p169 = pneg %p78
        %p170 = pneg %p75
        %p171 = pneg %p104
        %p172 = pneg %p101
        %p173 = scmp.lt.s32.totalorder %s15, 1
        %s174 = scalar_select %p173, %s15, 1
        %s175 = smul.addr %s174, 8
        %s176 = scalar_lea.vmem %s3, %s175
        %p177 = scmp.lt.s32.totalorder %s15, 1
        %s178 = scalar_select %p177, %s15, 1
        %s179 = smul.addr %s178, 2
        %s180 = smul.addr %s179, 8
        %s181 = scalar_lea.vmem %s0, %s180
        %p182 = scmp.lt.s32.totalorder %s15, 1
        %s183 = scalar_select %p182, %s15, 1
        %s184 = smul.addr %s183, 8
        %s185 = scalar_lea.vmem %s3, %s184
        %v186 = vld [vmem:[#allocation2] sm:$0xff]
        %v187 = vld [vmem:[#allocation2 + $0x8] sm:$0xff]
        %v188 = vld [vmem:[#allocation2 + $0x10] sm:$0xff]
        %v189 = vld [vmem:[#allocation2 + $0x18] sm:$0xff]
        %v190 = vld [vmem:[#allocation2 + $0x20] sm:$0xff]
        %v191 = vld [vmem:[#allocation2 + $0x28] sm:$0xff]
        %v192 = vld [vmem:[#allocation2 + $0x30] sm:$0xff]
        %v193 = vld [vmem:[#allocation2 + $0x38] sm:$0xff]
        %v194 = vld [vmem:[#allocation2 + $0x40] sm:$0xff]
        %v195 = vld [vmem:[#allocation2 + $0x48] sm:$0xff]
        %v196 = vld [vmem:[#allocation2 + $0x50] sm:$0xff]
        %v197 = vld [vmem:[#allocation2 + $0x58] sm:$0xff]
        %v198 = vld [vmem:[#allocation2 + $0x60] sm:$0xff]
        %v199 = vld [vmem:[#allocation2 + $0x68] sm:$0xff]
        %v200 = vld [vmem:[#allocation2 + $0x70] sm:$0xff]
        %v201 = vld [vmem:[#allocation2 + $0x78] sm:$0xff]
        %v202 = vld [vmem:[#allocation2 + $0x80] sm:$0xff]
        %v203 = vld [vmem:[#allocation2 + $0x88] sm:$0xff]
        %v204 = vld [vmem:[#allocation2 + $0x90] sm:$0xff]
        %v205 = vld [vmem:[#allocation2 + $0x98] sm:$0xff]
        %v206 = vld [vmem:[#allocation2 + $0xa0] sm:$0xff]
        %v207 = vld [vmem:[#allocation2 + $0xa8] sm:$0xff]
        %v208 = vld [vmem:[#allocation2 + $0xb0] sm:$0xff]
        %v209 = vld [vmem:[#allocation2 + $0xb8] sm:$0xff]
        %v210 = vld [vmem:[#allocation2 + $0xc0] sm:$0xff]
        %v211 = vld [vmem:[#allocation2 + $0xc8] sm:$0xff]
        %v212 = vld [vmem:[#allocation2 + $0xd0] sm:$0xff]
        %v213 = vld [vmem:[#allocation2 + $0xd8] sm:$0xff]
        %v214 = vld [vmem:[#allocation2 + $0xe0] sm:$0xff]
        %v215 = vld [vmem:[#allocation2 + $0xe8] sm:$0xff]
        %v216 = vld [vmem:[#allocation2 + $0xf0] sm:$0xff]
        %v217 = vld [vmem:[#allocation2 + $0xf8] sm:$0xff]
        %v218 = vld [vmem:[%s2] sm:$0x1f]
        %v219 = vld [vmem:[%s181] sm:$0x1f]
        %v220 = vld [vmem:[%s181 + $0x8] sm:$0x1f]
        %221 = vmatpush.msra.mxu0 %v201
        %222 = vmatpush.msra.mxu0 %v200
        %223 = vmatpush.msra.mxu0 %v199
        %224 = vmatpush.msra.mxu0 %v198
        %225 = vmatpush.msra.mxu0 %v197
        %226 = vmatpush.msra.mxu0 %v196
        %227 = vmatpush.msra.mxu0 %v195
        %228 = vmatpush.msra.mxu0 %v194
        %229 = vmatpush.msra.mxu0 %v193
        %230 = vmatpush.msra.mxu0 %v192
        %231 = vmatpush.msra.mxu0 %v191
        %232 = vmatpush.msra.mxu0 %v190
        %233 = vmatpush.msra.mxu0 %v189
        %234 = vmatpush.msra.mxu0 %v188
        %235 = vmatpush.msra.mxu0 %v187
        %236 = vmatpush.msra.mxu0 %v186
        %237 = vmatmul.f32.gmra.mxu0 %v219
        %v238 = vpop.f32.mrf.mxu0
        %v239 = vadd.f32 %v218, %v238
        %240 = vdwg.mxu0
        %241 = vmatpush.msra.mxu0 %v217
        %242 = vmatpush.msra.mxu0 %v216
        %243 = vmatpush.msra.mxu0 %v215
        %244 = vmatpush.msra.mxu0 %v214
        %245 = vmatpush.msra.mxu0 %v213
        %246 = vmatpush.msra.mxu0 %v212
        %247 = vmatpush.msra.mxu0 %v211
        %248 = vmatpush.msra.mxu0 %v210
        %249 = vmatpush.msra.mxu0 %v209
        %250 = vmatpush.msra.mxu0 %v208
        %251 = vmatpush.msra.mxu0 %v207
        %252 = vmatpush.msra.mxu0 %v206
        %253 = vmatpush.msra.mxu0 %v205
        %254 = vmatpush.msra.mxu0 %v204
        %255 = vmatpush.msra.mxu0 %v203
        %256 = vmatpush.msra.mxu0 %v202
        %257 = vmatmul.f32.gmra.mxu0 %v220
        %v258 = vpop.f32.mrf.mxu0
        %v259 = vadd.f32 %v239, %v258
        %260 = vdwg.mxu0
        %261 = vst [vmem:[%s185] sm:$0x1f] %v259
        %p262 = scmp.lt.s32.totalorder %s15, 1
        %s263 = scalar_select %p262, %s15, 1
        %s264 = smul.addr %s263, 8
        %s265 = scalar_lea.vmem %s3, %s264
        // Predicated region
        $region37: #{tpu_custom_call.1} parent=31 // pred_check
          %p266 = pneg %p101
        $region38: #{tpu_custom_call.1} parent=31 // pred_check_branch
          %268 = sbr.rel (%p266) target = $region40
        $region39: #{tpu_custom_call.1} parent=31 // pred_region
          _
        $region40: #{tpu_custom_call.1} parent=31 // pred_fallthru
          _
      $region32: #{tpu_custom_call.1} parent=5 // pred_fallthru
        _
      %p269 = scmp.le.s32.totalorder 2, %s10
      // Predicated region
      $region41: #{tpu_custom_call.1} parent=5 // pred_check
        %p270 = pneg %p269
      $region42: #{tpu_custom_call.1} parent=5 // pred_check_branch
        %272 = sbr.rel (%p270) target = $region44
      $region43: #{tpu_custom_call.1} parent=5 // pred_region
        %s273 = ssub.s32 %s10, 2
        // Predicated region
        $region45: #{tpu_custom_call.1} parent=43 // pred_check
          %p274 = pneg %p107
        $region46: #{tpu_custom_call.1} parent=43 // pred_check_branch
          %276 = sbr.rel (%p274) target = $region48
        $region47: #{tpu_custom_call.1} parent=43 // pred_region
          %p277 = scmp.lt.s32.totalorder %s16, 1
          %s278 = scalar_select %p277, %s16, 1
          %s279 = smul.addr %s278, 8
          %s280 = scalar_lea.vmem %s3, %s279
        $region48: #{tpu_custom_call.1} parent=43 // pred_fallthru
          _
      $region44: #{tpu_custom_call.1} parent=5 // pred_fallthru
        _
    $region6: #{tpu_custom_call.1} parent=1 // loop_footer
      %s14 = sadd.s32 1, %s10
    $region7: #{tpu_custom_call.1} parent=1 // loop_footer_branch
      %9 = sbr.rel target = $region3
    $region8: #{tpu_custom_call.1} parent=1 // loop_exit
      _
    %281 = vsyncpa [#allocation3], 1
    %s282 = scalar_lea.sflag [#allocation3], 1
    %283 = vsyncpa %s282, 1

</llo_original>
